<compile_context>
chip_gen: v6e
topology: v6e:2x2x1
jax: 0.10.0
libtpu: 0.0.40
codegen_flags: <defaults>
</compile_context>

<pallas_src>
import jax
import jax.numpy as jnp
from jax.experimental import pallas as pl
from jax.experimental.pallas import tpu as pltpu

HIDDEN = 64        # LSTM hidden size (fixed by the module)
EMBED_DIM = 16     # self.embed_dim in the module
G = 3 * HIDDEN     # pruned gate width: [i | g | o]


def _pick_tk(d, max_tk=4096):
    """Largest multiple-of-128 divisor of d that is <= max_tk; fall back to d."""
    t = min(max_tk, d)
    t -= t % 128
    while t >= 128:
        if d % t == 0:
            return t
        t -= 128
    return d


def simple_lstm_kernel(x_ref, w_ref, b_ref, wf_ref, out_ref, acc_ref):
    """grid = (side, k). x:(1,B,tk) bf16, w:(1,tk,3H) bf16, b:(1,1,3H) f32,
    wf:(1,1,H) f32, out:(1,B,1) f32, acc scratch:(B,3H) f32."""
    k = pl.program_id(1)

    @pl.when(k == 0)
    def _():
        acc_ref[...] = jnp.zeros_like(acc_ref)

    # MXU: bf16 x bf16 with f32 accumulation.
    acc_ref[...] += jnp.dot(x_ref[0], w_ref[0], preferred_element_type=jnp.float32)

    @pl.when(k == pl.num_programs(1) - 1)
    def _():
        gates = acc_ref[...] + b_ref[0]                        # (B, 3H) f32
        i = jax.nn.sigmoid(gates[:, 0 * HIDDEN:1 * HIDDEN])
        g = jnp.tanh(gates[:, 1 * HIDDEN:2 * HIDDEN])
        o = jax.nn.sigmoid(gates[:, 2 * HIDDEN:3 * HIDDEN])
        h = o * jnp.tanh(i * g)                                # c0 = 0  =>  c = i*g
        # fc1 contribution of this side: VPU mul + lane reduce (no concat / no MXU).
        out_ref[0] = jnp.sum(h * wf_ref[0], axis=1, keepdims=True)


def simple_lstm_forward(left_tok, right_tok, packed, *, max_tk=4096):
    """left_tok, right_tok: (B, L) int32 token ids. packed: see pack_params_for_kernel."""
    B, L = left_tok.shape
    D = packed["w_x"].shape[1]
    assert L * EMBED_DIM == D, (
        f"token length {L} inconsistent with lstm_input_size {D} (expected L*16 == D)")

    # Glue: embedding gather + flatten (== .view(B, 1, -1) then squeeze the unit seq dim).
    emb = packed["embedding"]
    xl = jnp.take(emb, left_tok, axis=0).reshape(B, D)
    xr = jnp.take(emb, right_tok, axis=0).reshape(B, D)
    x = jnp.stack([xl, xr]).astype(jnp.bfloat16)               # (2, B, D)

    tk = _pick_tk(D, max_tk)
    num_k = D // tk

    part = pl.pallas_call(
        simple_lstm_kernel,
        out_shape=jax.ShapeDtypeStruct((2, B, 1), jnp.float32),
        grid=(2, num_k),
        in_specs=[
            pl.BlockSpec((1, B, tk), lambda s, k: (s, 0, k)),   # activations
            pl.BlockSpec((1, tk, G), lambda s, k: (s, k, 0)),   # pruned bf16 weights
            pl.BlockSpec((1, 1, G), lambda s, k: (s, 0, 0)),    # fused bias
            pl.BlockSpec((1, 1, HIDDEN), lambda s, k: (s, 0, 0)),  # fc1 half per side
        ],
        out_specs=pl.BlockSpec((1, B, 1), lambda s, k: (s, 0, 0)),
        scratch_shapes=[pltpu.VMEM((B, G), jnp.float32)],
        compiler_params=pltpu.CompilerParams(
            # side axis parallel (2 TCs on v7x), K axis is the reduction.
            dimension_semantics=("parallel", "arbitrary"),
            # explicit, sized safely for v7x's 64 MiB physical VMEM; tiles here use only
            # a few MiB (double-buffered bf16 weight tile = 2 * tk * 192 * 2 B).
            vmem_limit_bytes=32 * 1024 * 1024,
        ),
    )(x, packed["w_x"], packed["b_x"], packed["w_fc"])

    return part[0] + part[1] + packed["b_fc"].reshape(1, 1)    # (B, 1)


# ----------------------------- parameter handling -----------------------------

def init_params(key, vocab_size, embedding_dim):
    """PyTorch-layout parameters (the 'raw' module weights)."""
    lstm_input_size = int(embedding_dim * vocab_size * EMBED_DIM)
    ks = jax.random.split(key, 9)
    scale = 0.05
    return {
        "embedding":  jax.random.normal(ks[0], (vocab_size, EMBED_DIM), jnp.float32),
        "left_w_ih":  scale * jax.random.normal(ks[1], (4 * HIDDEN, lstm_input_size), jnp.float32),
        "left_b_ih":  scale * jax.random.normal(ks[2], (4 * HIDDEN,), jnp.float32),
        "left_b_hh":  scale * jax.random.normal(ks[3], (4 * HIDDEN,), jnp.float32),
        "right_w_ih": scale * jax.random.normal(ks[4], (4 * HIDDEN, lstm_input_size), jnp.float32),
        "right_b_ih": scale * jax.random.normal(ks[5], (4 * HIDDEN,), jnp.float32),
        "right_b_hh": scale * jax.random.normal(ks[6], (4 * HIDDEN,), jnp.float32),
        "fc1_w":      scale * jax.random.normal(ks[7], (1, 2 * HIDDEN), jnp.float32),
        "fc1_b":      scale * jax.random.normal(ks[8], (1,), jnp.float32),
    }


def pack_params_for_kernel(raw):
    """One-time packing: transpose, prune dead f gate, fuse biases, cast weights to bf16.
    Done at init so no transposes / extra HBM passes happen on the forward path."""
    H = HIDDEN

    def prune_t(w_ih):                                   # (4H, D) -> (D, 3H) [i|g|o]
        w = jnp.concatenate([w_ih[0 * H:1 * H], w_ih[2 * H:3 * H], w_ih[3 * H:4 * H]], axis=0)
        return w.T

    def prune_b(b_ih, b_hh):
        b = b_ih + b_hh
        return jnp.concatenate([b[0 * H:1 * H], b[2 * H:3 * H], b[3 * H:4 * H]]).reshape(1, G)

    w_x = jnp.stack([prune_t(raw["left_w_ih"]),
                     prune_t(raw["right_w_ih"])]).astype(jnp.bfloat16)       # (2, D, 3H)
    b_x = jnp.stack([prune_b(raw["left_b_ih"], raw["left_b_hh"]),
                     prune_b(raw["right_b_ih"], raw["right_b_hh"])])         # (2, 1, 3H) f32
    w_fc = raw["fc1_w"].reshape(2, 1, H)                                     # (2, 1, H)  f32
    return {
        "embedding": raw["embedding"],
        "w_x": w_x,
        "b_x": b_x,
        "w_fc": w_fc,
        "b_fc": raw["fc1_b"],
    }


def reference_forward(left_tok, right_tok, raw, matmul_dtype=jnp.float32):
    """Pure-JAX reference mirroring the PyTorch math. With matmul_dtype=bf16 it mirrors
    the kernel's weight/activation storage precision (f32 accumulation either way)."""
    B = left_tok.shape[0]
    emb = raw["embedding"]
    xl = jnp.take(emb, left_tok, axis=0).reshape(B, -1)
    xr = jnp.take(emb, right_tok, axis=0).reshape(B, -1)

    def step(x, w_ih, b_ih, b_hh):
        xq = x.astype(matmul_dtype).astype(jnp.float32)
        wq = w_ih.astype(matmul_dtype).astype(jnp.float32)
        gates = xq @ wq.T + b_ih + b_hh
        i, f, g, o = jnp.split(gates, 4, axis=1)          # f unused: c0 == 0
        c = jax.nn.sigmoid(i) * jnp.tanh(g)
        return jax.nn.sigmoid(o) * jnp.tanh(c)

    hl = step(xl, raw["left_w_ih"], raw["left_b_ih"], raw["left_b_hh"])
    hr = step(xr, raw["right_w_ih"], raw["right_b_ih"], raw["right_b_hh"])
    h = jnp.concatenate([hl, hr], axis=1)
    return h @ raw["fc1_w"].T + raw["fc1_b"]


if __name__ == "__main__":
    vocab_size = 8
    embedding_dim = 4          # "embedding_dim" arg of the module
    batch_size = 8             # NOTE: weights are read once per call, so larger B per
                               # call is the main throughput lever in production.
    seq_tokens = vocab_size * embedding_dim   # so L*16 == lstm_input_size (D = 512)

    key = jax.random.PRNGKey(0)
    kp, kl, kr = jax.random.split(key, 3)
    raw = init_params(kp, vocab_size, embedding_dim)
    packed = pack_params_for_kernel(raw)      # one-time packing, outside the forward path

    left = jax.random.randint(kl, (batch_size, seq_tokens), 0, vocab_size, jnp.int32)
    right = jax.random.randint(kr, (batch_size, seq_tokens), 0, vocab_size, jnp.int32)

    out = jax.block_until_ready(simple_lstm_forward(left, right, packed))
    assert out.shape == (batch_size, 1)

    # Tight check vs a reference that mirrors the kernel's bf16 storage precision.
    ref_bf16 = reference_forward(left, right, raw, matmul_dtype=jnp.bfloat16)
    assert jnp.allclose(out, ref_bf16, atol=1e-3, rtol=1e-3), "mismatch vs bf16-mirrored reference"

    # Loose check vs the pure-f32 PyTorch math (only bf16 weight-storage error remains).
    ref_f32 = reference_forward(left, right, raw)
    assert jnp.allclose(out, ref_f32, atol=5e-2, rtol=5e-2), "mismatch vs f32 reference"

    print("KERNEL_OK")
</pallas_src>

<mosaic_0001>
module attributes {stable_mosaic.version = 11 : i64} {
  func.func @simple_lstm_kernel(%arg0: i32, %arg1: i32, %arg2: memref<1x8x512xbf16, #tpu.memory_space<vmem>>, %arg3: memref<1x512x192xbf16, #tpu.memory_space<vmem>>, %arg4: memref<1x1x192xf32, #tpu.memory_space<vmem>>, %arg5: memref<1x1x64xf32, #tpu.memory_space<vmem>>, %arg6: memref<1x8x1xf32, #tpu.memory_space<vmem>>, %arg7: memref<8x192xf32, #tpu.memory_space<vmem>>) attributes {dimension_semantics = [#tpu.dimension_semantics<parallel>, #tpu.dimension_semantics<arbitrary>], iteration_bounds = array<i64: 2, 1>, scalar_prefetch = 0 : i64, scratch_operands = 1 : i64, tpu.core_type = #tpu.core_type<tc>, window_params = [{transform_indices = @transform_0, window_bounds = array<i64: 1, 8, 512>}, {transform_indices = @transform_1, window_bounds = array<i64: 1, 512, 192>}, {transform_indices = @transform_2, window_bounds = array<i64: 1, 1, 192>}, {transform_indices = @transform_3, window_bounds = array<i64: 1, 1, 64>}, {transform_indices = @transform_4, window_bounds = array<i64: 1, 8, 1>}]} {
    %c0_i32 = arith.constant 0 : i32
    %0 = arith.cmpi eq, %arg1, %c0_i32 : i32
    %1 = arith.extui %0 : i1 to i32
    %c0_i32_0 = arith.constant 0 : i32
    %2 = arith.cmpi ne, %1, %c0_i32_0 : i32
    scf.if %2 {
      %cst_12 = arith.constant 0.000000e+00 : f32
      %14 = vector.broadcast %cst_12 : f32 to vector<8x192xf32>
      %c0_13 = arith.constant 0 : index
      %c0_14 = arith.constant 0 : index
      %15 = vector.load %arg7[%c0_13, %c0_14] : memref<8x192xf32, #tpu.memory_space<vmem>>, vector<8x192xf32>
      tpu.vector_store %arg7[%c0_13, %c0_14], %14 {strides = array<i32>} : memref<8x192xf32, #tpu.memory_space<vmem>>, vector<8x192xf32>,
    } else {
    }
    %c0 = arith.constant 0 : index
    %c0_1 = arith.constant 0 : index
    %3 = vector.load %arg7[%c0, %c0_1] : memref<8x192xf32, #tpu.memory_space<vmem>>, vector<8x192xf32>
    %c0_2 = arith.constant 0 : index
    %c0_3 = arith.constant 0 : index
    %c0_4 = arith.constant 0 : index
    %4 = vector.load %arg2[%c0_2, %c0_3, %c0_4] : memref<1x8x512xbf16, #tpu.memory_space<vmem>>, vector<1x8x512xbf16>
    %5 = vector.shape_cast %4 : vector<1x8x512xbf16> to vector<8x512xbf16>
    %c0_5 = arith.constant 0 : index
    %c0_6 = arith.constant 0 : index
    %c0_7 = arith.constant 0 : index
    %6 = vector.load %arg3[%c0_5, %c0_6, %c0_7] : memref<1x512x192xbf16, #tpu.memory_space<vmem>>, vector<1x512x192xbf16>
    %7 = vector.shape_cast %6 : vector<1x512x192xbf16> to vector<512x192xbf16>
    %cst = arith.constant dense<0.000000e+00> : vector<8x192xf32>
    %8 = tpu.matmul %5, %7, %cst {dimension_numbers = #tpu.dot_dimension_numbers<[1], [0], [0], [1], [0, 0, 1, 1], [], []>} : vector<8x512xbf16>, vector<512x192xbf16>, vector<8x192xf32> -> vector<8x192xf32>
    %9 = arith.addf %3, %8 : vector<8x192xf32>
    %c0_8 = arith.constant 0 : index
    %c0_9 = arith.constant 0 : index
    %10 = vector.load %arg7[%c0_8, %c0_9] : memref<8x192xf32, #tpu.memory_space<vmem>>, vector<8x192xf32>
    tpu.vector_store %arg7[%c0_8, %c0_9], %9 {strides = array<i32>} : memref<8x192xf32, #tpu.memory_space<vmem>>, vector<8x192xf32>,
    %c0_i32_10 = arith.constant 0 : i32
    %11 = arith.cmpi eq, %arg1, %c0_i32_10 : i32
    %12 = arith.extui %11 : i1 to i32
    %c0_i32_11 = arith.constant 0 : i32
    %13 = arith.cmpi ne, %12, %c0_i32_11 : i32
    scf.if %13 {
      %c0_12 = arith.constant 0 : index
      %c0_13 = arith.constant 0 : index
      %14 = vector.load %arg7[%c0_12, %c0_13] : memref<8x192xf32, #tpu.memory_space<vmem>>, vector<8x192xf32>
      %c0_14 = arith.constant 0 : index
      %c0_15 = arith.constant 0 : index
      %c0_16 = arith.constant 0 : index
      %15 = vector.load %arg4[%c0_14, %c0_15, %c0_16] : memref<1x1x192xf32, #tpu.memory_space<vmem>>, vector<1x1x192xf32>
      %16 = vector.shape_cast %15 : vector<1x1x192xf32> to vector<1x192xf32>
      %17 = vector.broadcast %16 : vector<1x192xf32> to vector<8x192xf32>
      %18 = arith.addf %14, %17 : vector<8x192xf32>
      %19 = vector.extract_strided_slice %18 {offsets = [0, 0], sizes = [8, 64], strides = [1, 1]} : vector<8x192xf32> to vector<8x64xf32>
      %20 = arith.negf %19 : vector<8x64xf32>
      %21 = math.exp %20 : vector<8x64xf32>
      %cst_17 = arith.constant 1.000000e+00 : f32
      %22 = vector.broadcast %cst_17 : f32 to vector<8x64xf32>
      %23 = arith.addf %22, %21 : vector<8x64xf32>
      %24 = arith.divf %22, %23 : vector<8x64xf32>
      %25 = vector.extract_strided_slice %18 {offsets = [0, 64], sizes = [8, 64], strides = [1, 1]} : vector<8x192xf32> to vector<8x64xf32>
      %26 = math.tanh %25 : vector<8x64xf32>
      %27 = vector.extract_strided_slice %18 {offsets = [0, 128], sizes = [8, 64], strides = [1, 1]} : vector<8x192xf32> to vector<8x64xf32>
      %28 = arith.negf %27 : vector<8x64xf32>
      %29 = math.exp %28 : vector<8x64xf32>
      %cst_18 = arith.constant 1.000000e+00 : f32
      %30 = vector.broadcast %cst_18 : f32 to vector<8x64xf32>
      %31 = arith.addf %30, %29 : vector<8x64xf32>
      %32 = arith.divf %30, %31 : vector<8x64xf32>
      %33 = arith.mulf %24, %26 : vector<8x64xf32>
      %34 = math.tanh %33 : vector<8x64xf32>
      %35 = arith.mulf %32, %34 : vector<8x64xf32>
      %c0_19 = arith.constant 0 : index
      %c0_20 = arith.constant 0 : index
      %c0_21 = arith.constant 0 : index
      %36 = vector.load %arg5[%c0_19, %c0_20, %c0_21] : memref<1x1x64xf32, #tpu.memory_space<vmem>>, vector<1x1x64xf32>
      %37 = vector.shape_cast %36 : vector<1x1x64xf32> to vector<1x64xf32>
      %38 = vector.broadcast %37 : vector<1x64xf32> to vector<8x64xf32>
      %39 = arith.mulf %35, %38 : vector<8x64xf32>
      %cst_22 = arith.constant dense<0.000000e+00> : vector<8xf32>
      %40 = vector.multi_reduction <add>, %39, %cst_22 [1] : vector<8x64xf32> to vector<8xf32>
      %41 = vector.shape_cast %40 : vector<8xf32> to vector<8x1xf32>
      %c0_23 = arith.constant 0 : index
      %c0_24 = arith.constant 0 : index
      %c0_25 = arith.constant 0 : index
      %42 = vector.load %arg6[%c0_23, %c0_24, %c0_25] : memref<1x8x1xf32, #tpu.memory_space<vmem>>, vector<1x8x1xf32>
      %43 = vector.shape_cast %42 : vector<1x8x1xf32> to vector<8x1xf32>
      %44 = vector.shape_cast %41 : vector<8x1xf32> to vector<1x8x1xf32>
      tpu.vector_store %arg6[%c0_23, %c0_24, %c0_25], %44 {strides = array<i32>} : memref<1x8x1xf32, #tpu.memory_space<vmem>>, vector<1x8x1xf32>,
    } else {
    }
    return
  }
  func.func @transform_0(%arg0: i32, %arg1: i32) -> (i32, i32, i32) {
    %c0_i32 = arith.constant 0 : i32
    %c0_i32_0 = arith.constant 0 : i32
    return %arg0, %c0_i32, %arg1 : i32, i32, i32
  }
  func.func @transform_1(%arg0: i32, %arg1: i32) -> (i32, i32, i32) {
    %c0_i32 = arith.constant 0 : i32
    %c0_i32_0 = arith.constant 0 : i32
    return %arg0, %arg1, %c0_i32 : i32, i32, i32
  }
  func.func @transform_2(%arg0: i32, %arg1: i32) -> (i32, i32, i32) {
    %c0_i32 = arith.constant 0 : i32
    %c0_i32_0 = arith.constant 0 : i32
    %c0_i32_1 = arith.constant 0 : i32
    return %arg0, %c0_i32, %c0_i32_0 : i32, i32, i32
  }
  func.func @transform_3(%arg0: i32, %arg1: i32) -> (i32, i32, i32) {
    %c0_i32 = arith.constant 0 : i32
    %c0_i32_0 = arith.constant 0 : i32
    %c0_i32_1 = arith.constant 0 : i32
    return %arg0, %c0_i32, %c0_i32_0 : i32, i32, i32
  }
  func.func @transform_4(%arg0: i32, %arg1: i32) -> (i32, i32, i32) {
    %c0_i32 = arith.constant 0 : i32
    %c0_i32_0 = arith.constant 0 : i32
    %c0_i32_1 = arith.constant 0 : i32
    return %arg0, %c0_i32, %c0_i32_0 : i32, i32, i32
  }
}

</mosaic_0001>

<llo_original>
// kernel: tpu_custom_call.1
$region0: #{tpu_custom_call.1}
  #allocation0 [shape = 'u32[]', space=smem, size = 0x4, offset = 0x4, fixed_abs, tag = 'smem constant byte address 0x4 - core index']
  #allocation1 [shape = 'u32[144,128]{1,0:T(1,128)}', space=vmem, size = 0x12000, scoped, tag = 'internal scratch']
  #allocation2 [shape = 'f32[8,192]{1,0:T(8,128)}', space=vmem, size = 0x2000, scoped, tag = 'scratch operand']
  %s0 = inlined_call_operand.vmem [shape: bf16[2,8,512], index: 0, kind: input, shape index: {}]
  %s1 = inlined_call_operand.vmem [shape: bf16[2,512,192], index: 1, kind: input, shape index: {}]
  %s2 = inlined_call_operand.vmem [shape: f32[2,1,192], index: 2, kind: input, shape index: {}]
  %s3 = inlined_call_operand.vmem [shape: f32[2,1,64], index: 3, kind: input, shape index: {}]
  %s4 = inlined_call_operand.vmem [shape: f32[2,8,1], index: 4, kind: output, shape index: {}]
  %s5 = sld [smem:[#allocation0]]
  $region57: #{tpu_custom_call.1} parent=0
    _
  %s7 = ssub.s32 1, %s5
  %s8 = scalar_select 0, %s7, %s5
  loop: start=0, step=1, limit=4
  $region2: #{tpu_custom_call.1} parent=0 // loop_pre_header
    _
  $region3: #{tpu_custom_call.1} parent=0 // loop_header
    %s10 = sphi 0, %s14
    %p11 = scmp.ge.s32.totalorder %s10, 4
    %s17 = sphi 0, %s29
    %s18 = sphi 0, %s25
    %s19 = sphi 0, %s17
    %s20 = sphi 0, %s18
    %s21 = sphi 0, %s19
    %s22 = sphi 0, %s20
    %s34 = sphi 0, %s36
    %s37 = sphi 0, %s34
    %s38 = sphi 0, %s37
    %s54 = sphi 0, %s38
    %s62 = sphi 0, %s64
    %s65 = sphi 0, %s62
    %s66 = sphi 0, %s65
    %s82 = sphi 0, %s66
    %s88 = sphi 0, %s90
    %s91 = sphi 0, %s88
    %s92 = sphi 0, %s91
    %s108 = sphi 0, %s92
    %s114 = sphi 0, %s116
    %s117 = sphi 0, %s114
    %s118 = sphi 0, %s117
    %s134 = sphi 0, %s118
    %s140 = sphi 0, %s142
    %s143 = sphi 0, %s140
    %s144 = sphi 0, %s143
    %s160 = sphi 0, %s144
  $region4: #{tpu_custom_call.1} parent=0 // loop_header_branch
    %13 = sbr.rel (%p11) target = $region8
  $region5: #{tpu_custom_call.1} parent=0 // loop_body
    %s15 = ssub.s32 %s10, 1
    %s16 = ssub.s32 %s10, 2
    %s23 = sadd.s32 1, %s18
    %p24 = scmp.ge.s32.totalorder %s23, 1
    %s25 = scalar_select %p24, 0, %s23
    %s26 = sadd.s32 1, %s17
    %s27 = scalar_select %p24, %s26, %s17
    %p28 = scmp.ge.s32.totalorder %s27, 2
    %s29 = scalar_select %p28, 0, %s27
    %s30 = ssub.s32 %s17, %s29
    %s31 = ssub.s32 %s18, %s25
    %s32 = sor.u32 %s30, %s31
    %p33 = scmp.eq.s32.totalorder %s32, 0
    %s35 = sadd.s32 %s34, 1
    %s36 = scalar_select %p33, %s34, %s35
    %p39 = pneg %p33
    %p40 = scmp.eq.s32.totalorder %s10, 1
    %p41 = por %p39, %p40
    %p42 = scmp.ne.s32.totalorder %s34, %s37
    %p43 = scmp.eq.s32.totalorder %s10, 0
    %p44 = por %p42, %p43
    %p45 = scmp.ne.s32.totalorder %s34, %s37
    %p46 = scmp.eq.s32.totalorder %s15, 1
    %p47 = por %p45, %p46
    %p48 = scmp.ne.s32.totalorder %s37, %s38
    %p49 = scmp.eq.s32.totalorder %s15, 0
    %p50 = por %p48, %p49
    %p51 = scmp.ne.s32.totalorder %s37, %s38
    %p52 = scmp.eq.s32.totalorder %s16, 1
    %p53 = por %p51, %p52
    %p55 = scmp.ne.s32.totalorder %s38, %s54
    %p56 = scmp.eq.s32.totalorder %s16, 0
    %p57 = por %p55, %p56
    %s58 = ssub.s32 %s17, %s29
    %s59 = ssub.s32 %s18, %s25
    %s60 = sor.u32 %s58, %s59
    %p61 = scmp.eq.s32.totalorder %s60, 0
    %s63 = sadd.s32 %s62, 1
    %s64 = scalar_select %p61, %s62, %s63
    %p67 = pneg %p61
    %p68 = scmp.eq.s32.totalorder %s10, 1
    %p69 = por %p67, %p68
    %p70 = scmp.ne.s32.totalorder %s62, %s65
    %p71 = scmp.eq.s32.totalorder %s10, 0
    %p72 = por %p70, %p71
    %p73 = scmp.ne.s32.totalorder %s62, %s65
    %p74 = scmp.eq.s32.totalorder %s15, 1
    %p75 = por %p73, %p74
    %p76 = scmp.ne.s32.totalorder %s65, %s66
    %p77 = scmp.eq.s32.totalorder %s15, 0
    %p78 = por %p76, %p77
    %p79 = scmp.ne.s32.totalorder %s65, %s66
    %p80 = scmp.eq.s32.totalorder %s16, 1
    %p81 = por %p79, %p80
    %p83 = scmp.ne.s32.totalorder %s66, %s82
    %p84 = scmp.eq.s32.totalorder %s16, 0
    %p85 = por %p83, %p84
    %s86 = ssub.s32 %s17, %s29
    %p87 = scmp.eq.s32.totalorder %s86, 0
    %s89 = sadd.s32 %s88, 1
    %s90 = scalar_select %p87, %s88, %s89
    %p93 = pneg %p87
    %p94 = scmp.eq.s32.totalorder %s10, 1
    %p95 = por %p93, %p94
    %p96 = scmp.ne.s32.totalorder %s88, %s91
    %p97 = scmp.eq.s32.totalorder %s10, 0
    %p98 = por %p96, %p97
    %p99 = scmp.ne.s32.totalorder %s88, %s91
    %p100 = scmp.eq.s32.totalorder %s15, 1
    %p101 = por %p99, %p100
    %p102 = scmp.ne.s32.totalorder %s91, %s92
    %p103 = scmp.eq.s32.totalorder %s15, 0
    %p104 = por %p102, %p103
    %p105 = scmp.ne.s32.totalorder %s91, %s92
    %p106 = scmp.eq.s32.totalorder %s16, 1
    %p107 = por %p105, %p106
    %p109 = scmp.ne.s32.totalorder %s92, %s108
    %p110 = scmp.eq.s32.totalorder %s16, 0
    %p111 = por %p109, %p110
    %s112 = ssub.s32 %s17, %s29
    %p113 = scmp.eq.s32.totalorder %s112, 0
    %s115 = sadd.s32 %s114, 1
    %s116 = scalar_select %p113, %s114, %s115
    %p119 = pneg %p113
    %p120 = scmp.eq.s32.totalorder %s10, 1
    %p121 = por %p119, %p120
    %p122 = scmp.ne.s32.totalorder %s114, %s117
    %p123 = scmp.eq.s32.totalorder %s10, 0
    %p124 = por %p122, %p123
    %p125 = scmp.ne.s32.totalorder %s114, %s117
    %p126 = scmp.eq.s32.totalorder %s15, 1
    %p127 = por %p125, %p126
    %p128 = scmp.ne.s32.totalorder %s117, %s118
    %p129 = scmp.eq.s32.totalorder %s15, 0
    %p130 = por %p128, %p129
    %p131 = scmp.ne.s32.totalorder %s117, %s118
    %p132 = scmp.eq.s32.totalorder %s16, 1
    %p133 = por %p131, %p132
    %p135 = scmp.ne.s32.totalorder %s118, %s134
    %p136 = scmp.eq.s32.totalorder %s16, 0
    %p137 = por %p135, %p136
    %s138 = ssub.s32 %s17, %s29
    %p139 = scmp.eq.s32.totalorder %s138, 0
    %s141 = sadd.s32 %s140, 1
    %s142 = scalar_select %p139, %s140, %s141
    %p145 = pneg %p139
    %p146 = scmp.eq.s32.totalorder %s10, 1
    %p147 = por %p145, %p146
    %p148 = scmp.ne.s32.totalorder %s140, %s143
    %p149 = scmp.eq.s32.totalorder %s10, 0
    %p150 = por %p148, %p149
    %p151 = scmp.ne.s32.totalorder %s140, %s143
    %p152 = scmp.eq.s32.totalorder %s15, 1
    %p153 = por %p151, %p152
    %p154 = scmp.ne.s32.totalorder %s143, %s144
    %p155 = scmp.eq.s32.totalorder %s15, 0
    %p156 = por %p154, %p155
    %p157 = scmp.ne.s32.totalorder %s143, %s144
    %p158 = scmp.eq.s32.totalorder %s16, 1
    %p159 = por %p157, %p158
    %p161 = scmp.ne.s32.totalorder %s144, %s160
    %p162 = scmp.eq.s32.totalorder %s16, 0
    %p163 = por %p161, %p162
    %p164 = scmp.le.s32.totalorder 1, %s10
    %p165 = scmp.lt.s32.totalorder %s10, 3
    %p166 = pnand %p164, %p165
    %p167 = pneg %p166
    // Predicated region
    $region9: #{tpu_custom_call.1} parent=5 // pred_check
      _
    $region10: #{tpu_custom_call.1} parent=5 // pred_check_branch
      %169 = sbr.rel (%p166) target = $region12
    $region11: #{tpu_custom_call.1} parent=5 // pred_region
      %s170 = ssub.s32 %s10, 1
    $region12: #{tpu_custom_call.1} parent=5 // pred_fallthru
      _
    %p171 = scmp.lt.s32.totalorder %s10, 2
    // Predicated region
    $region13: #{tpu_custom_call.1} parent=5 // pred_check
      %p172 = pneg %p171
    $region14: #{tpu_custom_call.1} parent=5 // pred_check_branch
      %174 = sbr.rel (%p172) target = $region16
    $region15: #{tpu_custom_call.1} parent=5 // pred_region
      // Predicated region
      $region17: #{tpu_custom_call.1} parent=15 // pred_check
        %p175 = pneg %p44
      $region18: #{tpu_custom_call.1} parent=15 // pred_check_branch
        %177 = sbr.rel (%p175) target = $region20
      $region19: #{tpu_custom_call.1} parent=15 // pred_region
        %s178 = smul.u32 4, %s18
        %p179 = scmp.lt.s32.totalorder %s17, 1
        %s180 = scalar_select %p179, %s17, 1
        %p181 = scmp.lt.s32.totalorder %s178, 3
        %s182 = scalar_select %p181, %s178, 3
        %s183 = smul.addr %s180, 4
        %s184 = sadd.s32 %s182, %s183
        %s185 = smul.addr %s184, 4
        %s186 = scalar_lea.vmem %s0, %s185
        %s187 = smul.u32 4, %s18
      $region20: #{tpu_custom_call.1} parent=15 // pred_fallthru
        _
      // Predicated region
      $region21: #{tpu_custom_call.1} parent=15 // pred_check
        %p188 = pneg %p72
      $region22: #{tpu_custom_call.1} parent=15 // pred_check_branch
        %190 = sbr.rel (%p188) target = $region24
      $region23: #{tpu_custom_call.1} parent=15 // pred_region
        %s191 = smul.u32 64, %s18
        %p192 = scmp.lt.s32.totalorder %s17, 1
        %s193 = scalar_select %p192, %s17, 1
        %p194 = scmp.lt.s32.totalorder %s191, 63
        %s195 = scalar_select %p194, %s191, 63
        %s196 = smul.addr %s195, 2
        %s197 = smul.addr %s193, 128
        %s198 = sadd.s32 %s196, %s197
        %s199 = smul.addr %s198, 4
        %s200 = scalar_lea.vmem %s1, %s199
        %s201 = smul.u32 64, %s18
      $region24: #{tpu_custom_call.1} parent=15 // pred_fallthru
        _
      // Predicated region
      $region25: #{tpu_custom_call.1} parent=15 // pred_check
        %p202 = pneg %p98
      $region26: #{tpu_custom_call.1} parent=15 // pred_check_branch
        %204 = sbr.rel (%p202) target = $region28
      $region27: #{tpu_custom_call.1} parent=15 // pred_region
        %p205 = scmp.lt.s32.totalorder %s17, 1
        %s206 = scalar_select %p205, %s17, 1
        %s207 = smul.addr %s206, 2
        %s208 = scalar_lea.vmem %s2, %s207
      $region28: #{tpu_custom_call.1} parent=15 // pred_fallthru
        _
      // Predicated region
      $region29: #{tpu_custom_call.1} parent=15 // pred_check
        %p209 = pneg %p124
      $region30: #{tpu_custom_call.1} parent=15 // pred_check_branch
        %211 = sbr.rel (%p209) target = $region32
      $region31: #{tpu_custom_call.1} parent=15 // pred_region
        %p212 = scmp.lt.s32.totalorder %s17, 1
        %s213 = scalar_select %p212, %s17, 1
        %s214 = scalar_lea.vmem %s3, %s213
      $region32: #{tpu_custom_call.1} parent=15 // pred_fallthru
        _
    $region16: #{tpu_custom_call.1} parent=5 // pred_fallthru
      _
    %p215 = scmp.le.s32.totalorder 1, %s10
    %p216 = scmp.lt.s32.totalorder %s10, 3
    %p217 = pnand %p215, %p216
    %p218 = pneg %p217
    // Predicated region
    $region33: #{tpu_custom_call.1} parent=5 // pred_check
      _
    $region34: #{tpu_custom_call.1} parent=5 // pred_check_branch
      %220 = sbr.rel (%p217) target = $region36
    $region35: #{tpu_custom_call.1} parent=5 // pred_region
      %s221 = ssub.s32 %s10, 1
      %s222 = smul.u32 4, %s20
      %p223 = scmp.lt.s32.totalorder %s19, 1
      %s224 = scalar_select %p223, %s19, 1
      %p225 = scmp.lt.s32.totalorder %s222, 3
      %s226 = scalar_select %p225, %s222, 3
      %s227 = smul.addr %s224, 4
      %s228 = sadd.s32 %s226, %s227
      %s229 = smul.addr %s228, 4
      %s230 = scalar_lea.vmem %s0, %s229
      %p231 = pneg %p50
      %p232 = pneg %p47
      %s233 = smul.u32 64, %s20
      %p234 = scmp.lt.s32.totalorder %s19, 1
      %s235 = scalar_select %p234, %s19, 1
      %p236 = scmp.lt.s32.totalorder %s233, 63
      %s237 = scalar_select %p236, %s233, 63
      %s238 = smul.addr %s237, 2
      %s239 = smul.addr %s235, 128
      %s240 = sadd.s32 %s238, %s239
      %s241 = smul.addr %s240, 4
      %s242 = scalar_lea.vmem %s1, %s241
      %p243 = pneg %p78
      %p244 = pneg %p75
      %p245 = scmp.lt.s32.totalorder %s19, 1
      %s246 = scalar_select %p245, %s19, 1
      %s247 = smul.addr %s246, 2
      %s248 = scalar_lea.vmem %s2, %s247
      %p249 = pneg %p104
      %p250 = pneg %p101
      %p251 = scmp.lt.s32.totalorder %s19, 1
      %s252 = scalar_select %p251, %s19, 1
      %s253 = scalar_lea.vmem %s3, %s252
      %p254 = pneg %p130
      %p255 = pneg %p127
      %p256 = pneg %p156
      %p257 = pneg %p153
      %p258 = scmp.lt.s32.totalorder %s19, 1
      %s259 = scalar_select %p258, %s19, 1
      %s260 = smul.addr %s259, 8
      %s261 = scalar_lea.vmem %s4, %s260
      %s262 = smul.u32 4, %s20
      %p263 = scmp.lt.s32.totalorder %s19, 1
      %s264 = scalar_select %p263, %s19, 1
      %p265 = scmp.lt.s32.totalorder %s262, 3
      %s266 = scalar_select %p265, %s262, 3
      %s267 = smul.addr %s264, 4
      %s268 = sadd.s32 %s266, %s267
      %s269 = smul.addr %s268, 4
      %s270 = scalar_lea.vmem %s0, %s269
      %s271 = smul.u32 4, %s20
      %s272 = smul.u32 64, %s20
      %p273 = scmp.lt.s32.totalorder %s19, 1
      %s274 = scalar_select %p273, %s19, 1
      %p275 = scmp.lt.s32.totalorder %s272, 63
      %s276 = scalar_select %p275, %s272, 63
      %s277 = smul.addr %s276, 2
      %s278 = smul.addr %s274, 128
      %s279 = sadd.s32 %s277, %s278
      %s280 = smul.addr %s279, 4
      %s281 = scalar_lea.vmem %s1, %s280
      %s282 = smul.u32 64, %s20
      %p283 = scmp.lt.s32.totalorder %s19, 1
      %s284 = scalar_select %p283, %s19, 1
      %s285 = smul.addr %s284, 2
      %s286 = scalar_lea.vmem %s2, %s285
      %p287 = scmp.lt.s32.totalorder %s19, 1
      %s288 = scalar_select %p287, %s19, 1
      %s289 = scalar_lea.vmem %s3, %s288
      %p290 = scmp.lt.s32.totalorder %s19, 1
      %s291 = scalar_select %p290, %s19, 1
      %s292 = smul.addr %s291, 8
      %s293 = scalar_lea.vmem %s4, %s292
      %p294 = scmp.eq.s32.totalorder %s20, 0
      // Predicated region
      $region37: #{tpu_custom_call.1} parent=35 // pred_check
        %p295 = pneg %p294
      $region38: #{tpu_custom_call.1} parent=35 // pred_check_branch
        %297 = sbr.rel (%p295) target = $region40
      $region39: #{tpu_custom_call.1} parent=35 // pred_region
        %298 = vst [vmem:[#allocation2] sm:$0xff] 0.0
        %vm299 = vcmask 523264
        %300 = vst.msk [vmem:[#allocation2 + $0x8] sm:$0xff] %vm299, 0.0
      $region40: #{tpu_custom_call.1} parent=35 // pred_fallthru
        _
      %v301 = vld [vmem:[#allocation2] sm:$0xff]
      %v302 = vld [vmem:[#allocation2 + $0x8] sm:$0xff]
      %v303 = vld [vmem:[%s270] sm:$0xff]
      %v304 = vld [vmem:[%s270 + $0x8] sm:$0xff]
      %v305 = vld [vmem:[%s281] sm:$0xff]
      %v306 = vld [vmem:[%s281 + $0x8] sm:$0xff]
      %v307 = vld [vmem:[%s281 + $0x10] sm:$0xff]
      %v308 = vld [vmem:[%s281 + $0x18] sm:$0xff]
      %v309 = vld [vmem:[%s281 + $0x20] sm:$0xff]
      %v310 = vld [vmem:[%s281 + $0x28] sm:$0xff]
      %v311 = vld [vmem:[%s281 + $0x30] sm:$0xff]
      %v312 = vld [vmem:[%s281 + $0x38] sm:$0xff]
      %v313 = vld [vmem:[%s281 + $0x40] sm:$0xff]
      %v314 = vld [vmem:[%s281 + $0x48] sm:$0xff]
      %v315 = vld [vmem:[%s281 + $0x50] sm:$0xff]
      %v316 = vld [vmem:[%s281 + $0x58] sm:$0xff]
      %v317 = vld [vmem:[%s281 + $0x60] sm:$0xff]
      %v318 = vld [vmem:[%s281 + $0x68] sm:$0xff]
      %v319 = vld [vmem:[%s281 + $0x70] sm:$0xff]
      %v320 = vld [vmem:[%s281 + $0x78] sm:$0xff]
      %v321 = vld [vmem:[%s281 + $0x80] sm:$0xff]
      %v322 = vld [vmem:[%s281 + $0x88] sm:$0xff]
      %v323 = vld [vmem:[%s281 + $0x90] sm:$0xff]
      %v324 = vld [vmem:[%s281 + $0x98] sm:$0xff]
      %v325 = vld [vmem:[%s281 + $0xa0] sm:$0xff]
      %v326 = vld [vmem:[%s281 + $0xa8] sm:$0xff]
      %v327 = vld [vmem:[%s281 + $0xb0] sm:$0xff]
      %v328 = vld [vmem:[%s281 + $0xb8] sm:$0xff]
      %v329 = vld [vmem:[%s281 + $0xc0] sm:$0xff]
      %v330 = vld [vmem:[%s281 + $0xc8] sm:$0xff]
      %v331 = vld [vmem:[%s281 + $0xd0] sm:$0xff]
      %v332 = vld [vmem:[%s281 + $0xd8] sm:$0xff]
      %v333 = vld [vmem:[%s281 + $0xe0] sm:$0xff]
      %v334 = vld [vmem:[%s281 + $0xe8] sm:$0xff]
      %v335 = vld [vmem:[%s281 + $0xf0] sm:$0xff]
      %v336 = vld [vmem:[%s281 + $0xf8] sm:$0xff]
      %v337 = vld [vmem:[%s281 + $0x100] sm:$0xff]
      %v338 = vld [vmem:[%s281 + $0x108] sm:$0xff]
      %v339 = vld [vmem:[%s281 + $0x110] sm:$0xff]
      %v340 = vld [vmem:[%s281 + $0x118] sm:$0xff]
      %v341 = vld [vmem:[%s281 + $0x120] sm:$0xff]
      %v342 = vld [vmem:[%s281 + $0x128] sm:$0xff]
      %v343 = vld [vmem:[%s281 + $0x130] sm:$0xff]
      %v344 = vld [vmem:[%s281 + $0x138] sm:$0xff]
      %v345 = vld [vmem:[%s281 + $0x140] sm:$0xff]
      %v346 = vld [vmem:[%s281 + $0x148] sm:$0xff]
      %v347 = vld [vmem:[%s281 + $0x150] sm:$0xff]
      %v348 = vld [vmem:[%s281 + $0x158] sm:$0xff]
      %v349 = vld [vmem:[%s281 + $0x160] sm:$0xff]
      %v350 = vld [vmem:[%s281 + $0x168] sm:$0xff]
      %v351 = vld [vmem:[%s281 + $0x170] sm:$0xff]
      %v352 = vld [vmem:[%s281 + $0x178] sm:$0xff]
      %v353 = vld [vmem:[%s281 + $0x180] sm:$0xff]
      %v354 = vld [vmem:[%s281 + $0x188] sm:$0xff]
      %v355 = vld [vmem:[%s281 + $0x190] sm:$0xff]
      %v356 = vld [vmem:[%s281 + $0x198] sm:$0xff]
      %v357 = vld [vmem:[%s281 + $0x1a0] sm:$0xff]
      %v358 = vld [vmem:[%s281 + $0x1a8] sm:$0xff]
      %v359 = vld [vmem:[%s281 + $0x1b0] sm:$0xff]
      %v360 = vld [vmem:[%s281 + $0x1b8] sm:$0xff]
      %v361 = vld [vmem:[%s281 + $0x1c0] sm:$0xff]
      %v362 = vld [vmem:[%s281 + $0x1c8] sm:$0xff]
      %v363 = vld [vmem:[%s281 + $0x1d0] sm:$0xff]
      %v364 = vld [vmem:[%s281 + $0x1d8] sm:$0xff]
      %v365 = vld [vmem:[%s281 + $0x1e0] sm:$0xff]
      %v366 = vld [vmem:[%s281 + $0x1e8] sm:$0xff]
      %v367 = vld [vmem:[%s281 + $0x1f0] sm:$0xff]
      %v368 = vld [vmem:[%s281 + $0x1f8] sm:$0xff]
      %v371 = vunpack.c.l.b16 %v303
      %v372 = vunpack.c.h.b16 %v303
      %v373 = vunpack.c.l.b16 %v304
      %v374 = vunpack.c.h.b16 %v304
      %v375 = vpack.c.b16 %v371, %v371
      %v376 = vpack.c.b16 %v372, %v372
      %v377 = vpack.c.b16 %v373, %v373
      %v378 = vpack.c.b16 %v374, %v374
      %v447 = vunpack.c.l.b16 %v305
      %v448 = vunpack.c.h.b16 %v305
      %v449 = vunpack.c.l.b16 %v306
      %v450 = vunpack.c.h.b16 %v306
      %v451 = vunpack.c.l.b16 %v307
      %v452 = vunpack.c.h.b16 %v307
      %v453 = vunpack.c.l.b16 %v308
      %v454 = vunpack.c.h.b16 %v308
      %v455 = vunpack.c.l.b16 %v309
      %v456 = vunpack.c.h.b16 %v309
      %v457 = vunpack.c.l.b16 %v310
      %v458 = vunpack.c.h.b16 %v310
      %v459 = vunpack.c.l.b16 %v311
      %v460 = vunpack.c.h.b16 %v311
      %v461 = vunpack.c.l.b16 %v312
      %v462 = vunpack.c.h.b16 %v312
      %v463 = vunpack.c.l.b16 %v313
      %v464 = vunpack.c.h.b16 %v313
      %v465 = vunpack.c.l.b16 %v314
      %v466 = vunpack.c.h.b16 %v314
      %v467 = vunpack.c.l.b16 %v315
      %v468 = vunpack.c.h.b16 %v315
      %v469 = vunpack.c.l.b16 %v316
      %v470 = vunpack.c.h.b16 %v316
      %v471 = vunpack.c.l.b16 %v317
      %v472 = vunpack.c.h.b16 %v317
      %v473 = vunpack.c.l.b16 %v318
      %v474 = vunpack.c.h.b16 %v318
      %v475 = vunpack.c.l.b16 %v319
      %v476 = vunpack.c.h.b16 %v319
      %v477 = vunpack.c.l.b16 %v320
      %v478 = vunpack.c.h.b16 %v320
      %v479 = vunpack.c.l.b16 %v321
      %v480 = vunpack.c.h.b16 %v321
      %v481 = vunpack.c.l.b16 %v322
      %v482 = vunpack.c.h.b16 %v322
      %v483 = vunpack.c.l.b16 %v323
      %v484 = vunpack.c.h.b16 %v323
      %v485 = vunpack.c.l.b16 %v324
      %v486 = vunpack.c.h.b16 %v324
      %v487 = vunpack.c.l.b16 %v325
      %v488 = vunpack.c.h.b16 %v325
      %v489 = vunpack.c.l.b16 %v326
      %v490 = vunpack.c.h.b16 %v326
      %v491 = vunpack.c.l.b16 %v327
      %v492 = vunpack.c.h.b16 %v327
      %v493 = vunpack.c.l.b16 %v328
      %v494 = vunpack.c.h.b16 %v328
      %v495 = vunpack.c.l.b16 %v329
      %v496 = vunpack.c.h.b16 %v329
      %v497 = vunpack.c.l.b16 %v330
      %v498 = vunpack.c.h.b16 %v330
      %v499 = vunpack.c.l.b16 %v331
      %v500 = vunpack.c.h.b16 %v331
      %v501 = vunpack.c.l.b16 %v332
      %v502 = vunpack.c.h.b16 %v332
      %v503 = vunpack.c.l.b16 %v333
      %v504 = vunpack.c.h.b16 %v333
      %v505 = vunpack.c.l.b16 %v334
      %v506 = vunpack.c.h.b16 %v334
      %v507 = vunpack.c.l.b16 %v335
      %v508 = vunpack.c.h.b16 %v335
      %v509 = vunpack.c.l.b16 %v336
      %v510 = vunpack.c.h.b16 %v336
      %v511 = vunpack.c.l.b16 %v337
      %v512 = vunpack.c.h.b16 %v337
      %v513 = vunpack.c.l.b16 %v338
      %v514 = vunpack.c.h.b16 %v338
      %v515 = vunpack.c.l.b16 %v339
      %v516 = vunpack.c.h.b16 %v339
      %v517 = vunpack.c.l.b16 %v340
      %v518 = vunpack.c.h.b16 %v340
      %v519 = vunpack.c.l.b16 %v341
      %v520 = vunpack.c.h.b16 %v341
      %v521 = vunpack.c.l.b16 %v342
      %v522 = vunpack.c.h.b16 %v342
      %v523 = vunpack.c.l.b16 %v343
      %v524 = vunpack.c.h.b16 %v343
      %v525 = vunpack.c.l.b16 %v344
      %v526 = vunpack.c.h.b16 %v344
      %v527 = vunpack.c.l.b16 %v345
      %v528 = vunpack.c.h.b16 %v345
      %v529 = vunpack.c.l.b16 %v346
      %v530 = vunpack.c.h.b16 %v346
      %v531 = vunpack.c.l.b16 %v347
      %v532 = vunpack.c.h.b16 %v347
      %v533 = vunpack.c.l.b16 %v348
      %v534 = vunpack.c.h.b16 %v348
      %v535 = vunpack.c.l.b16 %v349
      %v536 = vunpack.c.h.b16 %v349
      %v537 = vunpack.c.l.b16 %v350
      %v538 = vunpack.c.h.b16 %v350
      %v539 = vunpack.c.l.b16 %v351
      %v540 = vunpack.c.h.b16 %v351
      %v541 = vunpack.c.l.b16 %v352
      %v542 = vunpack.c.h.b16 %v352
      %v543 = vunpack.c.l.b16 %v353
      %v544 = vunpack.c.h.b16 %v353
      %v545 = vunpack.c.l.b16 %v354
      %v546 = vunpack.c.h.b16 %v354
      %v547 = vunpack.c.l.b16 %v355
      %v548 = vunpack.c.h.b16 %v355
      %v549 = vunpack.c.l.b16 %v356
      %v550 = vunpack.c.h.b16 %v356
      %v551 = vunpack.c.l.b16 %v357
      %v552 = vunpack.c.h.b16 %v357
      %v553 = vunpack.c.l.b16 %v358
      %v554 = vunpack.c.h.b16 %v358
      %v555 = vunpack.c.l.b16 %v359
      %v556 = vunpack.c.h.b16 %v359
      %v557 = vunpack.c.l.b16 %v360
      %v558 = vunpack.c.h.b16 %v360
      %v559 = vunpack.c.l.b16 %v361
      %v560 = vunpack.c.h.b16 %v361
      %v561 = vunpack.c.l.b16 %v362
      %v562 = vunpack.c.h.b16 %v362
      %v563 = vunpack.c.l.b16 %v363
      %v564 = vunpack.c.h.b16 %v363
      %v565 = vunpack.c.l.b16 %v364
      %v566 = vunpack.c.h.b16 %v364
      %v567 = vunpack.c.l.b16 %v365
      %v568 = vunpack.c.h.b16 %v365
      %v569 = vunpack.c.l.b16 %v366
      %v570 = vunpack.c.h.b16 %v366
      %v571 = vunpack.c.l.b16 %v367
      %v572 = vunpack.c.h.b16 %v367
      %v573 = vunpack.c.l.b16 %v368
      %v574 = vunpack.c.h.b16 %v368
      %v575 = vpack.c.b16 %v449, %v447
      %v576 = vpack.c.b16 %v450, %v448
      %v577 = vpack.c.b16 %v453, %v451
      %v578 = vpack.c.b16 %v454, %v452
      %v579 = vpack.c.b16 %v457, %v455
      %v580 = vpack.c.b16 %v458, %v456
      %v581 = vpack.c.b16 %v461, %v459
      %v582 = vpack.c.b16 %v462, %v460
      %v583 = vpack.c.b16 %v465, %v463
      %v584 = vpack.c.b16 %v466, %v464
      %v585 = vpack.c.b16 %v469, %v467
      %v586 = vpack.c.b16 %v470, %v468
      %v587 = vpack.c.b16 %v473, %v471
      %v588 = vpack.c.b16 %v474, %v472
      %v589 = vpack.c.b16 %v477, %v475
      %v590 = vpack.c.b16 %v478, %v476
      %v591 = vpack.c.b16 %v481, %v479
      %v592 = vpack.c.b16 %v482, %v480
      %v593 = vpack.c.b16 %v485, %v483
      %v594 = vpack.c.b16 %v486, %v484
      %v595 = vpack.c.b16 %v489, %v487
      %v596 = vpack.c.b16 %v490, %v488
      %v597 = vpack.c.b16 %v493, %v491
      %v598 = vpack.c.b16 %v494, %v492
      %v599 = vpack.c.b16 %v497, %v495
      %v600 = vpack.c.b16 %v498, %v496
      %v601 = vpack.c.b16 %v501, %v499
      %v602 = vpack.c.b16 %v502, %v500
      %v603 = vpack.c.b16 %v505, %v503
      %v604 = vpack.c.b16 %v506, %v504
      %v605 = vpack.c.b16 %v509, %v507
      %v606 = vpack.c.b16 %v510, %v508
      %v607 = vpack.c.b16 %v513, %v511
      %v608 = vpack.c.b16 %v514, %v512
      %v609 = vpack.c.b16 %v517, %v515
      %v610 = vpack.c.b16 %v518, %v516
      %v611 = vpack.c.b16 %v521, %v519
      %v612 = vpack.c.b16 %v522, %v520
      %v613 = vpack.c.b16 %v525, %v523
      %v614 = vpack.c.b16 %v526, %v524
      %v615 = vpack.c.b16 %v529, %v527
      %v616 = vpack.c.b16 %v530, %v528
      %v617 = vpack.c.b16 %v533, %v531
      %v618 = vpack.c.b16 %v534, %v532
      %v619 = vpack.c.b16 %v537, %v535
      %v620 = vpack.c.b16 %v538, %v536
      %v621 = vpack.c.b16 %v541, %v539
      %v622 = vpack.c.b16 %v542, %v540
      %v623 = vpack.c.b16 %v545, %v543
      %v624 = vpack.c.b16 %v546, %v544
      %v625 = vpack.c.b16 %v549, %v547
      %v626 = vpack.c.b16 %v550, %v548
      %v627 = vpack.c.b16 %v553, %v551
      %v628 = vpack.c.b16 %v554, %v552
      %v629 = vpack.c.b16 %v557, %v555
      %v630 = vpack.c.b16 %v558, %v556
      %v631 = vpack.c.b16 %v561, %v559
      %v632 = vpack.c.b16 %v562, %v560
      %v633 = vpack.c.b16 %v565, %v563
      %v634 = vpack.c.b16 %v566, %v564
      %v635 = vpack.c.b16 %v569, %v567
      %v636 = vpack.c.b16 %v570, %v568
      %v637 = vpack.c.b16 %v573, %v571
      %v638 = vpack.c.b16 %v574, %v572
      %703 = vmatprep.subr.bf16.mxu0 %v590
      %704 = vmatpush1.bf16.msra.mxu0 %v589
      %705 = vmatprep.subr.bf16.mxu0 %v588
      %706 = vmatpush1.bf16.msra.mxu0 %v587
      %707 = vmatprep.subr.bf16.mxu0 %v586
      %708 = vmatpush1.bf16.msra.mxu0 %v585
      %709 = vmatprep.subr.bf16.mxu0 %v584
      %710 = vmatpush1.bf16.msra.mxu0 %v583
      %711 = vmatprep.subr.bf16.mxu0 %v582
      %712 = vmatpush1.bf16.msra.mxu0 %v581
      %713 = vmatprep.subr.bf16.mxu0 %v580
      %714 = vmatpush1.bf16.msra.mxu0 %v579
      %715 = vmatprep.subr.bf16.mxu0 %v578
      %716 = vmatpush1.bf16.msra.mxu0 %v577
      %717 = vmatprep.subr.bf16.mxu0 %v576
      %718 = vmatpush1.bf16.msra.mxu0 %v575
      %719 = vmatprep.subr.bf16.mxu0 %v606
      %720 = vmatpush2.bf16.msra.mxu0 %v605
      %721 = vmatprep.subr.bf16.mxu0 %v604
      %722 = vmatpush2.bf16.msra.mxu0 %v603
      %723 = vmatprep.subr.bf16.mxu0 %v602
      %724 = vmatpush2.bf16.msra.mxu0 %v601
      %725 = vmatprep.subr.bf16.mxu0 %v600
      %726 = vmatpush2.bf16.msra.mxu0 %v599
      %727 = vmatprep.subr.bf16.mxu0 %v598
      %728 = vmatpush2.bf16.msra.mxu0 %v597
      %729 = vmatprep.subr.bf16.mxu0 %v596
      %730 = vmatpush2.bf16.msra.mxu0 %v595
      %731 = vmatprep.subr.bf16.mxu0 %v594
      %732 = vmatpush2.bf16.msra.mxu0 %v593
      %733 = vmatprep.subr.bf16.mxu0 %v592
      %734 = vmatpush2.bf16.msra.mxu0 %v591
      %735 = vmatprep.mubr.bf16.mxu0 %v376
      %736 = vmatmul.mubr.bf16.gmra.mxu0 %v375
      %v737 = vpop.f32.mrf.mxu0
      %v738 = vadd.f32 0.0, %v737
      %v739 = vpop.f32.mrf.mxu0
      %v740 = vadd.f32 0.0, %v739
      %v741 = vpop.f32.mrf.mxu0
      %v742 = vpop.f32.mrf.mxu0
      %743 = vdwg.mxu0
      %744 = vmatprep.subr.bf16.mxu0 %v622
      %745 = vmatpush1.bf16.msra.mxu0 %v621
      %746 = vmatprep.subr.bf16.mxu0 %v620
      %747 = vmatpush1.bf16.msra.mxu0 %v619
      %748 = vmatprep.subr.bf16.mxu0 %v618
      %749 = vmatpush1.bf16.msra.mxu0 %v617
      %750 = vmatprep.subr.bf16.mxu0 %v616
      %751 = vmatpush1.bf16.msra.mxu0 %v615
      %752 = vmatprep.subr.bf16.mxu0 %v614
      %753 = vmatpush1.bf16.msra.mxu0 %v613
      %754 = vmatprep.subr.bf16.mxu0 %v612
      %755 = vmatpush1.bf16.msra.mxu0 %v611
      %756 = vmatprep.subr.bf16.mxu0 %v610
      %757 = vmatpush1.bf16.msra.mxu0 %v609
      %758 = vmatprep.subr.bf16.mxu0 %v608
      %759 = vmatpush1.bf16.msra.mxu0 %v607
      %760 = vmatprep.subr.bf16.mxu0 %v638
      %761 = vmatpush2.bf16.msra.mxu0 %v637
      %762 = vmatprep.subr.bf16.mxu0 %v636
      %763 = vmatpush2.bf16.msra.mxu0 %v635
      %764 = vmatprep.subr.bf16.mxu0 %v634
      %765 = vmatpush2.bf16.msra.mxu0 %v633
      %766 = vmatprep.subr.bf16.mxu0 %v632
      %767 = vmatpush2.bf16.msra.mxu0 %v631
      %768 = vmatprep.subr.bf16.mxu0 %v630
      %769 = vmatpush2.bf16.msra.mxu0 %v629
      %770 = vmatprep.subr.bf16.mxu0 %v628
      %771 = vmatpush2.bf16.msra.mxu0 %v627
      %772 = vmatprep.subr.bf16.mxu0 %v626
      %773 = vmatpush2.bf16.msra.mxu0 %v625
      %774 = vmatprep.subr.bf16.mxu0 %v624
      %775 = vmatpush2.bf16.msra.mxu0 %v623
      %776 = vmatprep.mubr.bf16.mxu0 %v378
      %777 = vmatmul.mubr.bf16.gmra.mxu0 %v377
      %v778 = vpop.f32.mrf.mxu0
      %v779 = vadd.f32 %v738, %v778
      %v780 = vpop.f32.mrf.mxu0
      %v781 = vadd.f32 %v740, %v780
      %v782 = vpop.f32.mrf.mxu0
      %v783 = vpop.f32.mrf.mxu0
      %784 = vdwg.mxu0
      %v785 = vadd.f32 %v301, %v779
      %v786 = vadd.f32 %v302, %v781
      %787 = vst [vmem:[#allocation2] sm:$0xff] %v785
      %vm788 = vcmask 523264
      %789 = vst.msk [vmem:[#allocation2 + $0x8] sm:$0xff] %vm788, %v786
      // Predicated region
      $region41: #{tpu_custom_call.1} parent=35 // pred_check
        %p790 = pneg %p294
      $region42: #{tpu_custom_call.1} parent=35 // pred_check_branch
        %792 = sbr.rel (%p790) target = $region44
      $region43: #{tpu_custom_call.1} parent=35 // pred_region
        %v793 = vld [vmem:[#allocation2] sm:$0xff]
        %v794 = vld [vmem:[#allocation2 + $0x8] sm:$0xff]
        %v795 = vld [vmem:[%s286] sm:$0x3]
        %v797 = vlaneseq
        %v798 = vshrl.u32 %v797, 7
        %v799 = vsub.s32 0, %v798
        %v800 = vrot.slane %v795, %v799
        %v801 = vlaneseq
        %v802 = vshrl.u32 %v801, 7
        %v803 = vsub.s32 1, %v802
        %v804 = vrot.slane %v795, %v803
        %v807 = vadd.f32 %v793, %v800
        %v808 = vadd.f32 %v794, %v804
        %v809 = vxor.u32 %v807, 2147483648
        %v810 = vmul.f32 %v809, 1.442695
        %v811 = vpow.pop %v810
        %v812 = vadd.f32 %v811, 1.0
        %v813 = vrcp.pop %v812
        %v814 = vmul.f32 1.0, %v813
        %v815 = vtanh.pop %v807
        %v816 = vxor.u32 %v808, 2147483648
        %v817 = vmul.f32 %v816, 1.442695
        %v818 = vpow.pop %v817
        %v819 = vadd.f32 %v818, 1.0
        %v820 = vrcp.pop %v819
        %v821 = vmul.f32 1.0, %v820
        %823 = vrot.lane.b32.xlu0 %v815, 64
        %v824 = vpop.permute.xlu0 %823
        %v826 = vmul.f32 %v814, %v824
        %v827 = vtanh.pop %v826
        %v828 = vmul.f32 %v821, %v827
        %v829 = vld [vmem:[%s289] sm:$0x1]
        %v831 = vlaneseq
        %v832 = vshrl.u32 %v831, 7
        %v833 = vsub.s32 0, %v832
        %v834 = vrot.slane %v829, %v833
        %v836 = vmul.f32 %v828, %v834
        %v837 = vsel %vm788, %v836, 0.0
        %838 = vadd.xlane.f32.xlu0 %v837
        %v839 = vpop.xlane.xlu0 %838
        %vm840 = vcmask 7168
        %841 = vst.msk [vmem:[%s293] sm:$0xff] %vm840, %v839
      $region44: #{tpu_custom_call.1} parent=35 // pred_fallthru
        _
      %p842 = scmp.lt.s32.totalorder %s19, 1
      %s843 = scalar_select %p842, %s19, 1
      %s844 = smul.addr %s843, 8
      %s845 = scalar_lea.vmem %s4, %s844
      // Predicated region
      $region45: #{tpu_custom_call.1} parent=35 // pred_check
        %p846 = pneg %p153
      $region46: #{tpu_custom_call.1} parent=35 // pred_check_branch
        %848 = sbr.rel (%p846) target = $region48
      $region47: #{tpu_custom_call.1} parent=35 // pred_region
        _
      $region48: #{tpu_custom_call.1} parent=35 // pred_fallthru
        _
    $region36: #{tpu_custom_call.1} parent=5 // pred_fallthru
      _
    %p849 = scmp.le.s32.totalorder 2, %s10
    // Predicated region
    $region49: #{tpu_custom_call.1} parent=5 // pred_check
      %p850 = pneg %p849
    $region50: #{tpu_custom_call.1} parent=5 // pred_check_branch
      %852 = sbr.rel (%p850) target = $region52
    $region51: #{tpu_custom_call.1} parent=5 // pred_region
      %s853 = ssub.s32 %s10, 2
      // Predicated region
      $region53: #{tpu_custom_call.1} parent=51 // pred_check
        %p854 = pneg %p159
      $region54: #{tpu_custom_call.1} parent=51 // pred_check_branch
        %856 = sbr.rel (%p854) target = $region56
      $region55: #{tpu_custom_call.1} parent=51 // pred_region
        %p857 = scmp.lt.s32.totalorder %s21, 1
        %s858 = scalar_select %p857, %s21, 1
        %s859 = smul.addr %s858, 8
        %s860 = scalar_lea.vmem %s4, %s859
      $region56: #{tpu_custom_call.1} parent=51 // pred_fallthru
        _
    $region52: #{tpu_custom_call.1} parent=5 // pred_fallthru
      _
  $region6: #{tpu_custom_call.1} parent=0 // loop_footer
    %s14 = sadd.s32 1, %s10
  $region7: #{tpu_custom_call.1} parent=0 // loop_footer_branch
    %9 = sbr.rel target = $region3
  $region8: #{tpu_custom_call.1} parent=0 // loop_exit
    _

</llo_original>
